<compile_context>
chip_gen: v5e
topology: v5e:2x2
jax: 0.10.0
libtpu: 0.0.40
codegen_flags: <defaults>
</compile_context>

<pallas_src>
import math

import jax
import jax.numpy as jnp
from jax.experimental import pallas as pl
from jax.experimental.pallas import tpu as pltpu

_LANE = 128


def _round_up(x: int, m: int) -> int:
    return ((x + m - 1) // m) * m


def _cdiv(a: int, b: int) -> int:
    return (a + b - 1) // b


def _sublane_multiple(itemsize: int) -> int:
    # f32 -> 8 rows/vreg, bf16 -> 16, int8/fp8 -> 32
    return {4: 8, 2: 16, 1: 32}.get(itemsize, 8)


def _default_vmem_limit_bytes() -> int:
    # Per-generation scoped-VMEM limit: ~3/4 of physical VMEM.
    # v5e/v6e: 128 MiB physical -> ~96 MiB; v7x: 64 MiB -> 48 MiB.
    phys = 64 * 1024 * 1024  # conservative fallback (v7x per-TC VMEM)
    try:
        info = pltpu.get_tpu_info()
        phys = int(getattr(info, "vmem_capacity_bytes", phys) or phys)
    except Exception:
        pass
    return max(32 << 20, min(phys * 3 // 4, 112 << 20))


# ----------------------------- kernels --------------------------------------


def _linear_kernel_single_k(x_ref, w_ref, b_ref, o_ref):
    # Whole K in one panel: plain NN matmul on the MXU, fused bias add, direct
    # store. No accumulator scratch, no control flow.
    o_ref[...] = (
        jnp.dot(x_ref[...], w_ref[...], preferred_element_type=jnp.float32)
        + b_ref[...]
    ).astype(o_ref.dtype)


def _linear_kernel_multi_k_f32(x_ref, w_ref, b_ref, o_ref):
    # f32 output: accumulate straight into the resident output block (its
    # (i, j) block index is constant across K) -- no separate VMEM scratch.
    k = pl.program_id(2)

    @pl.when(k == 0)
    def _():
        o_ref[...] = jnp.broadcast_to(b_ref[...], o_ref.shape)

    o_ref[...] += jnp.dot(x_ref[...], w_ref[...],
                          preferred_element_type=jnp.float32)


def _linear_kernel_multi_k_acc(x_ref, w_ref, b_ref, o_ref, acc_ref):
    # Narrow output dtype: accumulate in an f32 VMEM scratch, cast once at end.
    k = pl.program_id(2)

    @pl.when(k == 0)
    def _():
        acc_ref[...] = jnp.broadcast_to(b_ref[...], acc_ref.shape)

    acc_ref[...] += jnp.dot(x_ref[...], w_ref[...],
                            preferred_element_type=jnp.float32)

    @pl.when(k == pl.num_programs(2) - 1)
    def _():
        o_ref[...] = acc_ref[...].astype(o_ref.dtype)


# ----------------------------- wrapper ---------------------------------------


def make_linear_classifier(weight, bias, *, tm=None, tn=None, tk=None,
                           compute_dtype=None, vmem_limit_bytes=None):
    """Prepare nn.Linear params once and return `apply(x) -> logits`.

    weight: [n_classes, in_dim] (PyTorch layout), bias: [n_classes].
    compute_dtype: optional (e.g. jnp.bfloat16) cast of x/W before the MXU dot;
    accumulation stays f32.  Default None keeps the input dtype (exact numerics).
    """
    n_classes, in_dim = weight.shape
    assert bias.shape == (n_classes,)

    if compute_dtype is not None:
        weight = weight.astype(compute_dtype)
    w_itemsize = weight.dtype.itemsize

    vmem_limit = int(vmem_limit_bytes or _default_vmem_limit_bytes())
    budget = int(vmem_limit * 0.8)          # headroom for compiler scratch

    k_full = _round_up(in_dim, _LANE)
    n_full = _round_up(n_classes, _LANE)

    # Prefer a fully resident weight panel: single N tile, single K panel.
    tk_ = k_full if tk is None else min(_round_up(tk, _LANE), k_full)
    tn_ = n_full if tn is None else min(_round_up(tn, _LANE), n_full)

    # Shrink the (double-buffered) weight panel to <=40% of the budget so x/out
    # tiles still fit; only triggers for very large heads / hidden dims.
    w_budget = budget * 2 // 5
    while 2 * tn_ * tk_ * w_itemsize > w_budget and tk_ > _LANE:
        tk_ = max(_LANE, (tk_ // 2) // _LANE * _LANE)
    while 2 * tn_ * tk_ * w_itemsize > w_budget and tn_ > _LANE:
        tn_ = max(_LANE, (tn_ // 2) // _LANE * _LANE)

    kp = _round_up(in_dim, tk_)
    np_ = _round_up(n_classes, tn_)
    n_k = kp // tk_

    # ---- one-time parameter prep (hoisted out of the per-call path) ----
    w_t = weight.T                                       # [in_dim, n_classes]
    if (kp, np_) != (in_dim, n_classes):
        w_t = jnp.pad(w_t, ((0, kp - in_dim), (0, np_ - n_classes)))
    b_p = bias.astype(jnp.float32)
    if np_ != n_classes:
        b_p = jnp.pad(b_p, (0, np_ - n_classes))
    b_p = b_p.reshape(1, np_)

    tm_default = tm

    def apply(x):
        orig_shape = x.shape
        if x.ndim != 2:
            x = x.reshape(-1, orig_shape[-1])
        B, in_dim_x = x.shape
        assert in_dim_x == in_dim, (in_dim_x, in_dim)

        out_dtype = x.dtype
        xc = x if compute_dtype is None else x.astype(compute_dtype)
        if xc.dtype != w_t.dtype:
            xc = xc.astype(w_t.dtype)
        x_itemsize = xc.dtype.itemsize
        out_itemsize = out_dtype.itemsize
        sub_m = _sublane_multiple(x_itemsize)

        bp_min = _round_up(B, sub_m)
        tm_ = 512 if tm_default is None else tm_default
        tm_ = min(_round_up(tm_, sub_m), bp_min)

        multi_k = n_k > 1
        out_is_f32 = out_dtype == jnp.float32

        def fits(tm_c):
            x_b = 2 * tm_c * tk_ * x_itemsize
            w_b = 2 * tn_ * tk_ * w_itemsize
            b_b = 2 * tn_ * 4
            o_b = 2 * tm_c * tn_ * out_itemsize
            acc = tm_c * tn_ * 4 if (multi_k and not out_is_f32) else 0
            return x_b + w_b + b_b + o_b + acc <= budget

        while not fits(tm_) and tm_ > sub_m:
            tm_ = max(sub_m, _round_up(tm_ // 2, sub_m))

        mp = _round_up(B, tm_)
        # Megacore: give v7x's second TensorCore a row tile when batch allows.
        if (tm_default is None and mp // tm_ == 1 and np_ // tn_ == 1
                and bp_min >= 256):
            tm_ = _round_up(_cdiv(bp_min, 2), sub_m)
            mp = _round_up(B, tm_)

        # Per-call x padding only when actually needed (skipped when aligned).
        if (mp, kp) != (B, in_dim):
            xc = jnp.pad(xc, ((0, mp - B), (0, kp - in_dim)))

        cost = pl.CostEstimate(
            flops=2 * B * in_dim * n_classes,
            transcendentals=0,
            bytes_accessed=(B * in_dim * x_itemsize
                            + in_dim * n_classes * w_itemsize
                            + n_classes * 4
                            + B * n_classes * out_itemsize),
        )

        if not multi_k:
            grid = (mp // tm_, np_ // tn_)
            out_p = pl.pallas_call(
                _linear_kernel_single_k,
                out_shape=jax.ShapeDtypeStruct((mp, np_), out_dtype),
                grid_spec=pltpu.PrefetchScalarGridSpec(
                    num_scalar_prefetch=0,
                    grid=grid,
                    in_specs=[
                        pl.BlockSpec((tm_, tk_), lambda i, j: (i, 0)),
                        pl.BlockSpec((tk_, tn_), lambda i, j: (0, j)),
                        pl.BlockSpec((1, tn_), lambda i, j: (0, j)),
                    ],
                    out_specs=pl.BlockSpec((tm_, tn_), lambda i, j: (i, j)),
                ),
                compiler_params=pltpu.CompilerParams(
                    dimension_semantics=("parallel", "parallel"),
                    vmem_limit_bytes=vmem_limit,
                ),
                cost_estimate=cost,
            )(xc, w_t, b_p)
        else:
            grid = (mp // tm_, np_ // tn_, n_k)
            if out_is_f32:
                kernel = _linear_kernel_multi_k_f32
                scratch = ()
            else:
                kernel = _linear_kernel_multi_k_acc
                scratch = (pltpu.VMEM((tm_, tn_), jnp.float32),)
            out_p = pl.pallas_call(
                kernel,
                out_shape=jax.ShapeDtypeStruct((mp, np_), out_dtype),
                grid_spec=pltpu.PrefetchScalarGridSpec(
                    num_scalar_prefetch=0,
                    grid=grid,
                    in_specs=[
                        pl.BlockSpec((tm_, tk_), lambda i, j, k: (i, k)),
                        pl.BlockSpec((tk_, tn_), lambda i, j, k: (k, j)),
                        pl.BlockSpec((1, tn_), lambda i, j, k: (0, j)),
                    ],
                    out_specs=pl.BlockSpec((tm_, tn_), lambda i, j, k: (i, j)),
                    scratch_shapes=scratch,
                ),
                compiler_params=pltpu.CompilerParams(
                    dimension_semantics=("parallel", "parallel", "arbitrary"),
                    vmem_limit_bytes=vmem_limit,
                ),
                cost_estimate=cost,
            )(xc, w_t, b_p)

        if (mp, np_) != (B, n_classes):
            out_p = out_p[:B, :n_classes]
        if len(orig_shape) != 2:
            out_p = out_p.reshape(*orig_shape[:-1], n_classes)
        return out_p

    return apply


def linear_classifier(x, weight, bias, **kwargs):
    """One-shot convenience wrapper (re-prepares params every call).
    Prefer make_linear_classifier(...) for repeated use."""
    return make_linear_classifier(weight, bias, **kwargs)(x)


def init_params(key, in_dim, n_classes):
    # Match PyTorch nn.Linear default init: U(-1/sqrt(in_dim), 1/sqrt(in_dim))
    kw, kb = jax.random.split(key)
    bound = 1.0 / math.sqrt(in_dim)
    weight = jax.random.uniform(kw, (n_classes, in_dim), jnp.float32,
                                minval=-bound, maxval=bound)
    bias = jax.random.uniform(kb, (n_classes,), jnp.float32,
                              minval=-bound, maxval=bound)
    return weight, bias


if __name__ == "__main__":
    key = jax.random.PRNGKey(0)
    k1, k2, k3, k4, k5, k6 = jax.random.split(key, 6)

    # --- Small shapes implied by the module: resident weight panel, single K
    #     step, no scratch, grid (1, 1). --------------------------------------
    B, in_dim, n_classes = 8, 32, 10
    x = jax.random.normal(k1, (B, in_dim), jnp.float32)
    weight, bias = init_params(k2, in_dim, n_classes)

    model = make_linear_classifier(weight, bias)   # params padded / prepped once
    y = model(x)
    jax.block_until_ready(y)
    y_ref = x @ weight.T + bias
    assert y.shape == (B, n_classes)
    assert jnp.allclose(y, y_ref, atol=1e-4, rtol=1e-4), (
        float(jnp.max(jnp.abs(y - y_ref))))

    # --- Non-aligned shapes, forced multi-tile grid: exercises the
    #     accumulate-into-output f32 multi-K kernel + padding/slicing. --------
    B2, in_dim2, n_classes2 = 136, 384, 200
    x2 = jax.random.normal(k3, (B2, in_dim2), jnp.float32)
    w2, b2 = init_params(k4, in_dim2, n_classes2)
    y2 = make_linear_classifier(w2, b2, tm=64, tn=128, tk=128)(x2)
    jax.block_until_ready(y2)
    y2_ref = x2 @ w2.T + b2
    assert y2.shape == (B2, n_classes2)
    assert jnp.allclose(y2, y2_ref, atol=1e-3, rtol=1e-3), (
        float(jnp.max(jnp.abs(y2 - y2_ref))))

    # --- bf16 compute / bf16 output: exercises the f32-scratch multi-K kernel.
    B3 = 40
    x3 = jax.random.normal(k5, (B3, in_dim2), jnp.float32).astype(jnp.bfloat16)
    w3, b3 = init_params(k6, in_dim2, n_classes2)
    y3 = make_linear_classifier(w3, b3, tk=128,
                                compute_dtype=jnp.bfloat16)(x3)
    jax.block_until_ready(y3)
    y3_ref = (x3.astype(jnp.float32)
              @ w3.astype(jnp.bfloat16).astype(jnp.float32).T + b3)
    assert y3.shape == (B3, n_classes2)
    assert jnp.allclose(y3.astype(jnp.float32), y3_ref, atol=5e-2, rtol=5e-2), (
        float(jnp.max(jnp.abs(y3.astype(jnp.float32) - y3_ref))))

    print("KERNEL_OK")
</pallas_src>

<mosaic_0001>
module attributes {stable_mosaic.version = 11 : i64} {
  func.func @_linear_kernel_single_k(%arg0: i32, %arg1: i32, %arg2: memref<8x128xf32, #tpu.memory_space<vmem>>, %arg3: memref<128x128xf32, #tpu.memory_space<vmem>>, %arg4: memref<1x128xf32, #tpu.memory_space<vmem>>, %arg5: memref<8x128xf32, #tpu.memory_space<vmem>>) attributes {dimension_semantics = [#tpu.dimension_semantics<parallel>, #tpu.dimension_semantics<parallel>], iteration_bounds = array<i64: 1, 1>, scalar_prefetch = 0 : i64, scratch_operands = 0 : i64, tpu.core_type = #tpu.core_type<tc>, window_params = [{transform_indices = @transform_0, window_bounds = array<i64: 8, 128>}, {transform_indices = @transform_1, window_bounds = array<i64: 128, 128>}, {transform_indices = @transform_2, window_bounds = array<i64: 1, 128>}, {transform_indices = @transform_3, window_bounds = array<i64: 8, 128>}]} {
    %c0 = arith.constant 0 : index
    %c0_0 = arith.constant 0 : index
    %0 = vector.load %arg2[%c0, %c0_0] : memref<8x128xf32, #tpu.memory_space<vmem>>, vector<8x128xf32>
    %c0_1 = arith.constant 0 : index
    %c0_2 = arith.constant 0 : index
    %1 = vector.load %arg3[%c0_1, %c0_2] : memref<128x128xf32, #tpu.memory_space<vmem>>, vector<128x128xf32>
    %cst = arith.constant dense<0.000000e+00> : vector<8x128xf32>
    %2 = tpu.matmul %0, %1, %cst {dimension_numbers = #tpu.dot_dimension_numbers<[1], [0], [0], [1], [0, 0, 1, 1], [], []>} : vector<8x128xf32>, vector<128x128xf32>, vector<8x128xf32> -> vector<8x128xf32>
    %c0_3 = arith.constant 0 : index
    %c0_4 = arith.constant 0 : index
    %3 = vector.load %arg4[%c0_3, %c0_4] : memref<1x128xf32, #tpu.memory_space<vmem>>, vector<1x128xf32>
    %4 = vector.broadcast %3 : vector<1x128xf32> to vector<8x128xf32>
    %5 = arith.addf %2, %4 : vector<8x128xf32>
    %c0_5 = arith.constant 0 : index
    %c0_6 = arith.constant 0 : index
    %6 = vector.load %arg5[%c0_5, %c0_6] : memref<8x128xf32, #tpu.memory_space<vmem>>, vector<8x128xf32>
    tpu.vector_store %arg5[%c0_5, %c0_6], %5 {strides = array<i32>} : memref<8x128xf32, #tpu.memory_space<vmem>>, vector<8x128xf32>,
    return
  }
  func.func @transform_0(%arg0: i32, %arg1: i32) -> (i32, i32) {
    %c0_i32 = arith.constant 0 : i32
    %c0_i32_0 = arith.constant 0 : i32
    return %arg0, %c0_i32 : i32, i32
  }
  func.func @transform_1(%arg0: i32, %arg1: i32) -> (i32, i32) {
    %c0_i32 = arith.constant 0 : i32
    %c0_i32_0 = arith.constant 0 : i32
    return %c0_i32, %arg1 : i32, i32
  }
  func.func @transform_2(%arg0: i32, %arg1: i32) -> (i32, i32) {
    %c0_i32 = arith.constant 0 : i32
    %c0_i32_0 = arith.constant 0 : i32
    return %c0_i32, %arg1 : i32, i32
  }
  func.func @transform_3(%arg0: i32, %arg1: i32) -> (i32, i32) {
    %c0_i32 = arith.constant 0 : i32
    return %arg0, %arg1 : i32, i32
  }
}

</mosaic_0001>

<llo_original>
// kernel: tpu_custom_call.1
$region0: #{tpu_custom_call.1}
  #allocation0 [shape = 'u32[]', space=smem, size = 0x4, offset = 0x4, fixed_abs, tag = 'smem constant byte address 0x4 - core index']
  #allocation1 [shape = 'u32[72,128]{1,0:T(1,128)}', space=vmem, size = 0x9000, scoped, tag = 'internal scratch']
  %s0 = inlined_call_operand.hbm [shape: f32[8,128], index: 0, kind: input, shape index: {}]
  %s1 = inlined_call_operand.hbm [shape: f32[128,128], index: 1, kind: input, shape index: {}]
  %s2 = inlined_call_operand.vmem [shape: f32[1,128], index: 2, kind: input, shape index: {}]
  %s3 = inlined_call_operand.hbm [shape: f32[8,128], index: 3, kind: output, shape index: {}]
  %s4 = sld [smem:[#allocation0]]
  $region30: #{tpu_custom_call.1} parent=0
    _
  %s6 = ssub.s32 1, %s4
  %s7 = scalar_select 0, %s6, %s4
  $region1: #{tpu_custom_call.1} parent=0
    #allocation2 [shape = 'u8[4096]{0}', space=vmem, size = 0x1000, scoped, tag = 'input window, operand 0, single buffered']
    #allocation3 [shape = 's32[1]{0}', space=sflag, size = 0x4, scoped, tag = 'scoped memory for tpu_custom_call.1']
    #allocation4 [shape = 's32[1]{0}', space=sflag, size = 0x4, scoped, tag = 'scoped memory for tpu_custom_call.1']
    #allocation5 [shape = 'u8[65536]{0}', space=vmem, size = 0x10000, scoped, tag = 'input window, operand 1, single buffered']
    #allocation6 [shape = 's32[1]{0}', space=sflag, size = 0x4, scoped, tag = 'scoped memory for tpu_custom_call.1']
    #allocation7 [shape = 'u8[4096]{0}', space=vmem, size = 0x1000, scoped, tag = 'output window, operand 0, single buffered']
    %8 = vsyncpa [#allocation3], 0
    %9 = vsyncpa [#allocation6], 0
    %10 = vsyncpa [#allocation4], 0
    // Predicated region
    $region2: #{tpu_custom_call.1} parent=1 // pred_check
      _
    $region3: #{tpu_custom_call.1} parent=1 // pred_check_branch
      %12 = sbr.rel (0) target = $region5
    $region4: #{tpu_custom_call.1} parent=1 // pred_region
      %14 = vsyncadd [#allocation3], 0
      %s16 = sshll.u32 %s0, 4
      %s17 = int_to_ptr.hbm [resolvable:$true] %s16
      %s18 = sshll.u32 [#allocation2], 4
      %s19 = int_to_ptr.vmem [resolvable:$true] %s18
      %21 = dma.hbm_to_vmem [thread:$0]  %s17, 128, %s19, [#allocation3]
    $region5: #{tpu_custom_call.1} parent=1 // pred_fallthru
      _
    // Predicated region
    $region6: #{tpu_custom_call.1} parent=1 // pred_check
      _
    $region7: #{tpu_custom_call.1} parent=1 // pred_check_branch
      %23 = sbr.rel (0) target = $region9
    $region8: #{tpu_custom_call.1} parent=1 // pred_region
      %25 = vsyncadd [#allocation6], 0
      %s26 = sshll.u32 %s1, 4
      %s27 = int_to_ptr.hbm [resolvable:$true] %s26
      %s28 = sshll.u32 [#allocation5], 4
      %s29 = int_to_ptr.vmem [resolvable:$true] %s28
      %34 = dma.hbm_to_vmem [thread:$0]  %s27, 2048, %s29, [#allocation6], 128, 128, 8
    $region9: #{tpu_custom_call.1} parent=1 // pred_fallthru
      _
    // Predicated region
    $region10: #{tpu_custom_call.1} parent=1 // pred_check
      _
    $region11: #{tpu_custom_call.1} parent=1 // pred_check_branch
      %36 = sbr.rel (0) target = $region13
    $region12: #{tpu_custom_call.1} parent=1 // pred_region
      _
    $region13: #{tpu_custom_call.1} parent=1 // pred_fallthru
      _
    // Predicated region
    $region14: #{tpu_custom_call.1} parent=1 // pred_check
      _
    $region15: #{tpu_custom_call.1} parent=1 // pred_check_branch
      %38 = sbr.rel (0) target = $region17
    $region16: #{tpu_custom_call.1} parent=1 // pred_region
      %40 = dma.done [#allocation3], 128
    $region17: #{tpu_custom_call.1} parent=1 // pred_fallthru
      _
    // Predicated region
    $region18: #{tpu_custom_call.1} parent=1 // pred_check
      _
    $region19: #{tpu_custom_call.1} parent=1 // pred_check_branch
      %42 = sbr.rel (0) target = $region21
    $region20: #{tpu_custom_call.1} parent=1 // pred_region
      %44 = dma.done [#allocation6], 2048
    $region21: #{tpu_custom_call.1} parent=1 // pred_fallthru
      _
    %v45 = vld [vmem:[#allocation2] sm:$0xff]
    %v46 = vld [vmem:[#allocation5] sm:$0xff]
    %v47 = vld [vmem:[#allocation5 + $0x8] sm:$0xff]
    %v48 = vld [vmem:[#allocation5 + $0x10] sm:$0xff]
    %v49 = vld [vmem:[#allocation5 + $0x18] sm:$0xff]
    %v50 = vld [vmem:[#allocation5 + $0x20] sm:$0xff]
    %v51 = vld [vmem:[#allocation5 + $0x28] sm:$0xff]
    %v52 = vld [vmem:[#allocation5 + $0x30] sm:$0xff]
    %v53 = vld [vmem:[#allocation5 + $0x38] sm:$0xff]
    %v54 = vld [vmem:[#allocation5 + $0x40] sm:$0xff]
    %v55 = vld [vmem:[#allocation5 + $0x48] sm:$0xff]
    %v56 = vld [vmem:[#allocation5 + $0x50] sm:$0xff]
    %v57 = vld [vmem:[#allocation5 + $0x58] sm:$0xff]
    %v58 = vld [vmem:[#allocation5 + $0x60] sm:$0xff]
    %v59 = vld [vmem:[#allocation5 + $0x68] sm:$0xff]
    %v60 = vld [vmem:[#allocation5 + $0x70] sm:$0xff]
    %v61 = vld [vmem:[#allocation5 + $0x78] sm:$0xff]
    %v62 = vld [vmem:[%s2] sm:$0x1]
    %v64 = vperm.slane %v62, 0
    %66 = vmatpush.msra.mxu0 %v61
    %67 = vmatpush.msra.mxu0 %v60
    %68 = vmatpush.msra.mxu0 %v59
    %69 = vmatpush.msra.mxu0 %v58
    %70 = vmatpush.msra.mxu0 %v57
    %71 = vmatpush.msra.mxu0 %v56
    %72 = vmatpush.msra.mxu0 %v55
    %73 = vmatpush.msra.mxu0 %v54
    %74 = vmatpush.msra.mxu0 %v53
    %75 = vmatpush.msra.mxu0 %v52
    %76 = vmatpush.msra.mxu0 %v51
    %77 = vmatpush.msra.mxu0 %v50
    %78 = vmatpush.msra.mxu0 %v49
    %79 = vmatpush.msra.mxu0 %v48
    %80 = vmatpush.msra.mxu0 %v47
    %81 = vmatpush.msra.mxu0 %v46
    %82 = vmatmul.f32.gmra.mxu0 %v45
    %v83 = vpop.f32.mrf.mxu0
    %v84 = vadd.f32 %v64, %v83
    %85 = vdwg.mxu0
    %86 = vst [vmem:[#allocation7] sm:$0xff] %v84
    // Predicated region
    $region22: #{tpu_custom_call.1} parent=1 // pred_check
      _
    $region23: #{tpu_custom_call.1} parent=1 // pred_check_branch
      %88 = sbr.rel (0) target = $region25
    $region24: #{tpu_custom_call.1} parent=1 // pred_region
      %90 = vsyncadd [#allocation4], 0
      %s92 = sshll.u32 [#allocation7], 4
      %s93 = int_to_ptr.vmem [resolvable:$true] %s92
      %s94 = sshll.u32 %s3, 4
      %s95 = int_to_ptr.hbm [resolvable:$true] %s94
      %97 = dma.vmem_to_hbm [thread:$0]  %s93, 128, %s95, [#allocation4]
    $region25: #{tpu_custom_call.1} parent=1 // pred_fallthru
      _
    // Predicated region
    $region26: #{tpu_custom_call.1} parent=1 // pred_check
      _
    $region27: #{tpu_custom_call.1} parent=1 // pred_check_branch
      %99 = sbr.rel (0) target = $region29
    $region28: #{tpu_custom_call.1} parent=1 // pred_region
      %101 = dma.done [#allocation4], 128
    $region29: #{tpu_custom_call.1} parent=1 // pred_fallthru
      _
    %102 = vsyncpa [#allocation3], 1
    %103 = vsyncpa [#allocation6], 1
    %104 = vsyncpa [#allocation4], 1

</llo_original>
